<compile_context>
chip_gen: v6e
topology: v6e:2x2x1
jax: 0.10.0
libtpu: 0.0.40
codegen_flags: <defaults>
</compile_context>

<pallas_src>
import functools
import math

import jax
import jax.numpy as jnp
from jax import lax
from jax.experimental import pallas as pl
from jax.experimental.pallas import tpu as pltpu


# ---------------------------------------------------------------------------
# Path A: small vocab, VMEM-resident table, one-hot MXU gather.
# ---------------------------------------------------------------------------
def _vmem_table_kernel(ids_ref, table_ref, out_ref, *, scale, vocab_size):
    # ids_ref:   (1, T) int32 token ids for this block (VMEM)
    # table_ref: (vocab, d_model) full embedding table (VMEM-resident: the
    #            constant index_map means it is DMA'd from HBM only once)
    # out_ref:   (T, d_model)
    ids = ids_ref[...]                                              # (1, T)
    t_tokens = out_ref.shape[0]

    # onehot_t[v, t] = (v == ids[t]); built transposed so the (1, T) ids only
    # broadcast along sublanes (cheap) -- no lane<->sublane relayout needed.
    row_ids = lax.broadcasted_iota(jnp.int32, (vocab_size, t_tokens), 0)
    onehot_t = (row_ids == ids).astype(table_ref.dtype)             # (V, T)

    # (V, T)^T @ (V, D) -> (T, D) on the MXU, f32 accumulation.
    gathered = lax.dot_general(
        onehot_t, table_ref[...],
        dimension_numbers=(((0,), (0,)), ((), ())),
        preferred_element_type=jnp.float32)

    out_ref[...] = (gathered * scale).astype(out_ref.dtype)


# ---------------------------------------------------------------------------
# Path B: large vocab, HBM table, manual double-buffered row-DMA gather.
# ---------------------------------------------------------------------------
def _hbm_gather_kernel(ids_ref, table_hbm, out_ref, rows_ref, sems,
                       *, scale, block_tokens, n_tok, unroll_issue):
    # ids_ref:   (n_tok,) int32 token ids, scalar-prefetched into SMEM
    # table_hbm: (vocab, d_model) embedding table, left in HBM (pl.ANY)
    # out_ref:   (block_tokens, d_model) output block (VMEM)
    # rows_ref:  (2 * block_tokens, d_model) VMEM gather scratch (2 slots)
    # sems:      DMA semaphores, one per slot
    i = pl.program_id(0)
    nb = pl.num_programs(0)

    def issue_block(block_idx, slot):
        base = block_idx * block_tokens

        @pl.loop(0, block_tokens, unroll=unroll_issue)
        def _(t):
            # Clamp so the (possibly padded) tail never reads ids OOB; the
            # duplicated rows land in the masked-off part of the last block.
            tok = jnp.minimum(base + t, n_tok - 1)
            row_id = ids_ref[tok]
            pltpu.make_async_copy(
                table_hbm.at[row_id],
                rows_ref.at[slot * block_tokens + t],
                sems.at[slot],
            ).start()

    # Prime the pipeline: fetch block 0 into slot 0 on the first grid step.
    @pl.when(i == 0)
    def _():
        issue_block(0, 0)

    slot = i % 2

    # Prefetch the next block's rows into the other slot while this block's
    # DMAs complete and are consumed (manual cross-step double buffering;
    # requires the sequential "arbitrary" grid axis).
    @pl.when(i + 1 < nb)
    def _():
        issue_block(i + 1, 1 - slot)

    # Wait for this block's rows.  All copies of a slot signal the same DMA
    # semaphore; waiting block_tokens times for one row's worth of bytes each
    # only returns once every row of the block has landed.
    @pl.loop(0, block_tokens)
    def _(t):
        pltpu.make_async_copy(
            table_hbm.at[0],
            rows_ref.at[slot * block_tokens + t],
            sems.at[slot],
        ).wait()

    start = slot * block_tokens
    if block_tokens % 8 == 0:
        start = pl.multiple_of(start, 8)
    cur = rows_ref[pl.ds(start, block_tokens), :]
    # Upcast before the scale so the VPU math is f32 on all generations
    # (v5e has no bf16 VPU math); store in the table dtype.
    out_ref[...] = (cur.astype(jnp.float32) * scale).astype(out_ref.dtype)


# ---------------------------------------------------------------------------
# Wrapper
# ---------------------------------------------------------------------------
def _round_up(x, m):
    return ((x + m - 1) // m) * m


def token_embeddings(x, embed_table, *, force_hbm_gather=False):
    """x: integer token ids of any shape; embed_table: (vocab, d_model)."""
    vocab_size, d_model = embed_table.shape
    lead_shape = tuple(x.shape)
    n_tok = int(math.prod(lead_shape))
    scale = math.sqrt(d_model)
    ids = x.reshape(n_tok).astype(jnp.int32)
    itemsize = embed_table.dtype.itemsize
    table_bytes = vocab_size * d_model * itemsize

    small_table = (vocab_size <= 1024) and (table_bytes <= 2 * 1024 * 1024)

    if small_table and not force_hbm_gather:
        # ---------------- Path A: VMEM-resident table ----------------
        T = n_tok if n_tok <= 8 else min(256, _round_up(n_tok, 8))
        n_blocks = pl.cdiv(n_tok, T)
        pad = n_blocks * T - n_tok
        ids_p = jnp.pad(ids, (0, pad)) if pad else ids
        ids2d = ids_p.reshape(n_blocks, T)

        out_flat = pl.pallas_call(
            functools.partial(_vmem_table_kernel, scale=scale,
                              vocab_size=vocab_size),
            out_shape=jax.ShapeDtypeStruct((n_tok, d_model), embed_table.dtype),
            grid_spec=pltpu.PrefetchScalarGridSpec(
                num_scalar_prefetch=0,
                grid=(n_blocks,),
                in_specs=[
                    pl.BlockSpec((1, T), lambda i: (i, 0)),
                    # Full table, constant block index -> loaded once, resident.
                    pl.BlockSpec((vocab_size, d_model), lambda i: (0, 0)),
                ],
                out_specs=pl.BlockSpec((T, d_model), lambda i: (i, 0)),
            ),
            compiler_params=pltpu.CompilerParams(
                dimension_semantics=("parallel",)),
        )(ids2d, embed_table)
    else:
        # ---------------- Path B: HBM manual-gather ----------------
        # Size T so 2x (rows scratch) + 2x (out block buffers) stays a few MiB
        # -> fits the default scoped VMEM on v5e/v6e/v7x without raising
        # vmem_limit_bytes.
        row_bytes = d_model * itemsize
        cap = (4 * 1024 * 1024) // (2 * row_bytes)
        cap = max(8, min(512, cap))
        cap = (cap // 8) * 8
        T = n_tok if n_tok <= 8 else min(cap, _round_up(n_tok, 8))
        n_blocks = pl.cdiv(n_tok, T)
        unroll_issue = T <= 32

        # TODO(synk): for very large B*S, chunk this pallas_call over the token
        # axis to bound the SMEM footprint of the scalar-prefetched ids.
        out_flat = pl.pallas_call(
            functools.partial(_hbm_gather_kernel, scale=scale,
                              block_tokens=T, n_tok=n_tok,
                              unroll_issue=unroll_issue),
            out_shape=jax.ShapeDtypeStruct((n_tok, d_model), embed_table.dtype),
            grid_spec=pltpu.PrefetchScalarGridSpec(
                num_scalar_prefetch=1,              # ids -> SMEM
                grid=(n_blocks,),
                in_specs=[pl.BlockSpec(memory_space=pl.ANY)],   # table in HBM
                out_specs=pl.BlockSpec((T, d_model), lambda i, ids_ref: (i, 0)),
                scratch_shapes=[
                    pltpu.VMEM((2 * T, d_model), embed_table.dtype),
                    pltpu.SemaphoreType.DMA((2,)),
                ],
            ),
            # "arbitrary": the cross-step double-buffer prefetch relies on
            # sequential grid execution (a "parallel" split would skip priming
            # on the second core).
            compiler_params=pltpu.CompilerParams(
                dimension_semantics=("arbitrary",)),
        )(ids, embed_table)

    return out_flat.reshape(*lead_shape, d_model)


if __name__ == "__main__":
    key = jax.random.PRNGKey(0)
    k_emb, k_ids, k_emb2, k_ids2 = jax.random.split(key, 4)

    B, S, d_model = 2, 8, 128

    # --- small-vocab fast path (VMEM-resident table, one-hot MXU gather) ---
    vocab_size = 64
    embed_table = jax.random.normal(k_emb, (vocab_size, d_model), dtype=jnp.float32)
    x = jax.random.randint(k_ids, (B, S), 0, vocab_size, dtype=jnp.int32)

    out = jax.block_until_ready(token_embeddings(x, embed_table))
    ref = embed_table[x] * math.sqrt(d_model)
    assert out.shape == (B, S, d_model)
    assert jnp.allclose(out, ref, atol=1e-5, rtol=1e-5)

    # --- large-vocab path (HBM table, double-buffered manual DMA gather) ---
    vocab_large = 4096
    embed_table2 = jax.random.normal(k_emb2, (vocab_large, d_model), dtype=jnp.float32)
    x2 = jax.random.randint(k_ids2, (B, S), 0, vocab_large, dtype=jnp.int32)

    out2 = jax.block_until_ready(token_embeddings(x2, embed_table2))
    ref2 = embed_table2[x2] * math.sqrt(d_model)
    assert out2.shape == (B, S, d_model)
    assert jnp.allclose(out2, ref2, atol=1e-5, rtol=1e-5)

    print("KERNEL_OK")
</pallas_src>

<mosaic_0001>
module attributes {stable_mosaic.version = 11 : i64} {
  func.func @_vmem_table_kernel(%arg0: i32, %arg1: memref<1x16xi32, #tpu.memory_space<vmem>>, %arg2: memref<64x128xf32, #tpu.memory_space<vmem>>, %arg3: memref<16x128xf32, #tpu.memory_space<vmem>>) attributes {dimension_semantics = [#tpu.dimension_semantics<parallel>], iteration_bounds = array<i64: 1>, scalar_prefetch = 0 : i64, scratch_operands = 0 : i64, tpu.core_type = #tpu.core_type<tc>, window_params = [{transform_indices = @transform_0, window_bounds = array<i64: 1, 16>}, {pipeline_mode = #tpu.pipeline_mode<synchronous>, transform_indices = @transform_1, window_bounds = array<i64: 64, 128>}, {transform_indices = @transform_2, window_bounds = array<i64: 16, 128>}]} {
    %c0 = arith.constant 0 : index
    %c0_0 = arith.constant 0 : index
    %0 = vector.load %arg1[%c0, %c0_0] : memref<1x16xi32, #tpu.memory_space<vmem>>, vector<1x16xi32>
    %1 = tpu.iota {dimensions = array<i32: 0>} : vector<64x16xi32>
    %2 = vector.broadcast %0 : vector<1x16xi32> to vector<64x16xi32>
    %3 = arith.cmpi eq, %1, %2 : vector<64x16xi32>
    %4 = arith.extui %3 : vector<64x16xi1> to vector<64x16xi32>
    %5 = arith.sitofp %4 : vector<64x16xi32> to vector<64x16xf32>
    %c0_1 = arith.constant 0 : index
    %c0_2 = arith.constant 0 : index
    %6 = vector.load %arg2[%c0_1, %c0_2] : memref<64x128xf32, #tpu.memory_space<vmem>>, vector<64x128xf32>
    %cst = arith.constant dense<0.000000e+00> : vector<16x128xf32>
    %7 = tpu.matmul %5, %6, %cst {dimension_numbers = #tpu.dot_dimension_numbers<[0], [0], [1], [1], [0, 1, 1, 1], [], []>} : vector<64x16xf32>, vector<64x128xf32>, vector<16x128xf32> -> vector<16x128xf32>
    %cst_3 = arith.constant 11.3137083 : f32
    %8 = vector.broadcast %cst_3 : f32 to vector<16x128xf32>
    %9 = arith.mulf %7, %8 : vector<16x128xf32>
    %c0_4 = arith.constant 0 : index
    %c0_5 = arith.constant 0 : index
    %10 = vector.load %arg3[%c0_4, %c0_5] : memref<16x128xf32, #tpu.memory_space<vmem>>, vector<16x128xf32>
    tpu.vector_store %arg3[%c0_4, %c0_5], %9 {strides = array<i32>} : memref<16x128xf32, #tpu.memory_space<vmem>>, vector<16x128xf32>,
    return
  }
  func.func @transform_0(%arg0: i32) -> (i32, i32) {
    %c0_i32 = arith.constant 0 : i32
    %c0_i32_0 = arith.constant 0 : i32
    return %arg0, %c0_i32 : i32, i32
  }
  func.func @transform_1(%arg0: i32) -> (i32, i32) {
    %c0_i32 = arith.constant 0 : i32
    %c0_i32_0 = arith.constant 0 : i32
    %c0_i32_1 = arith.constant 0 : i32
    return %c0_i32, %c0_i32_0 : i32, i32
  }
  func.func @transform_2(%arg0: i32) -> (i32, i32) {
    %c0_i32 = arith.constant 0 : i32
    %c0_i32_0 = arith.constant 0 : i32
    return %arg0, %c0_i32 : i32, i32
  }
}

</mosaic_0001>

<llo_original>
// kernel: tpu_custom_call.1
$region0: #{tpu_custom_call.1}
  #allocation0 [shape = 'u32[]', space=smem, size = 0x4, offset = 0x4, fixed_abs, tag = 'smem constant byte address 0x4 - core index']
  #allocation1 [shape = 'u32[144,128]{1,0:T(1,128)}', space=vmem, size = 0x12000, scoped, tag = 'internal scratch']
  %s0 = inlined_call_operand.hbm [shape: s32[1,16], index: 0, kind: input, shape index: {}]
  %s1 = inlined_call_operand.hbm [shape: f32[64,128], index: 1, kind: input, shape index: {}]
  %s2 = inlined_call_operand.hbm [shape: f32[16,128], index: 2, kind: output, shape index: {}]
  %s3 = sld [smem:[#allocation0]]
  $region26: #{tpu_custom_call.1} parent=0
    _
  %s5 = ssub.s32 1, %s3
  %s6 = scalar_select 0, %s5, %s3
  $region1: #{tpu_custom_call.1} parent=0
    #allocation2 [shape = 'u8[512]{0}', space=vmem, size = 0x400, scoped, tag = 'input window, operand 0, single buffered']
    #allocation3 [shape = 's32[1]{0}', space=sflag, size = 0x4, scoped, tag = 'scoped memory for tpu_custom_call.1']
    #allocation4 [shape = 's32[1]{0}', space=sflag, size = 0x4, scoped, tag = 'scoped memory for tpu_custom_call.1']
    #allocation5 [shape = 'u8[32768]{0}', space=vmem, size = 0x8000, scoped, tag = 'input window, operand 1, single buffered']
    #allocation6 [shape = 's32[1]{0}', space=sflag, size = 0x4, scoped, tag = 'scoped memory for tpu_custom_call.1']
    #allocation7 [shape = 'u8[8192]{0}', space=vmem, size = 0x2000, scoped, tag = 'output window, operand 0, single buffered']
    %7 = vsyncpa [#allocation3], 0
    %8 = vsyncpa [#allocation6], 0
    %9 = vsyncpa [#allocation4], 0
    // Predicated region
    $region2: #{tpu_custom_call.1} parent=1 // pred_check
      _
    $region3: #{tpu_custom_call.1} parent=1 // pred_check_branch
      %11 = sbr.rel (0) target = $region5
    $region4: #{tpu_custom_call.1} parent=1 // pred_region
      %s13 = ssub.s32 16, 16
      %14 = vsyncadd [#allocation3], %s13
      %s16 = sshll.u32 [#allocation2], 4
      %s17 = int_to_ptr.vmem [resolvable:$true] %s16
      %19 = dma.hbm_to_vmem [thread:$0]  %s0, 16, %s17, [#allocation3]
    $region5: #{tpu_custom_call.1} parent=1 // pred_fallthru
      _
    // Predicated region
    $region6: #{tpu_custom_call.1} parent=1 // pred_check
      _
    $region7: #{tpu_custom_call.1} parent=1 // pred_check_branch
      %21 = sbr.rel (0) target = $region9
    $region8: #{tpu_custom_call.1} parent=1 // pred_region
      %s23 = ssub.s32 1024, 1024
      %24 = vsyncadd [#allocation6], %s23
      %s25 = sshll.u32 [#allocation5], 4
      %s26 = int_to_ptr.vmem [resolvable:$true] %s25
      %31 = dma.hbm_to_vmem [thread:$0]  %s1, 1024, %s26, [#allocation6], 128, 128, 8
    $region9: #{tpu_custom_call.1} parent=1 // pred_fallthru
      _
    // Predicated region
    $region10: #{tpu_custom_call.1} parent=1 // pred_check
      _
    $region11: #{tpu_custom_call.1} parent=1 // pred_check_branch
      %33 = sbr.rel (0) target = $region13
    $region12: #{tpu_custom_call.1} parent=1 // pred_region
      %34 = dma.done [#allocation3], 16
    $region13: #{tpu_custom_call.1} parent=1 // pred_fallthru
      _
    // Predicated region
    $region14: #{tpu_custom_call.1} parent=1 // pred_check
      _
    $region15: #{tpu_custom_call.1} parent=1 // pred_check_branch
      %36 = sbr.rel (0) target = $region17
    $region16: #{tpu_custom_call.1} parent=1 // pred_region
      %37 = dma.done [#allocation6], 1024
    $region17: #{tpu_custom_call.1} parent=1 // pred_fallthru
      _
    %v38 = vld [vmem:[#allocation2] sm:$0x1]
    %v39 = vlaneseq
    %v40 = vshrl.u32 %v39, 7
    %v41 = vadd.s32 %v40, 8
    %v42 = vadd.s32 %v40, 16
    %v43 = vadd.s32 %v40, 24
    %v44 = vadd.s32 %v40, 32
    %v45 = vadd.s32 %v40, 40
    %v46 = vadd.s32 %v40, 48
    %v47 = vadd.s32 %v40, 56
    %v48 = vlaneseq
    %v49 = vshrl.u32 %v48, 7
    %v50 = vsub.s32 0, %v49
    %v51 = vrot.slane %v38, %v50
    %vm52 = vcmp.eq.s32.totalorder %v40, %v51
    %vm53 = vcmp.eq.s32.totalorder %v41, %v51
    %vm54 = vcmp.eq.s32.totalorder %v42, %v51
    %vm55 = vcmp.eq.s32.totalorder %v43, %v51
    %vm56 = vcmp.eq.s32.totalorder %v44, %v51
    %vm57 = vcmp.eq.s32.totalorder %v45, %v51
    %vm58 = vcmp.eq.s32.totalorder %v46, %v51
    %vm59 = vcmp.eq.s32.totalorder %v47, %v51
    %v60 = vsel %vm52, 1, 0
    %v61 = vsel %vm53, 1, 0
    %v62 = vsel %vm54, 1, 0
    %v63 = vsel %vm55, 1, 0
    %v64 = vsel %vm56, 1, 0
    %v65 = vsel %vm57, 1, 0
    %v66 = vsel %vm58, 1, 0
    %v67 = vsel %vm59, 1, 0
    %v68 = vcvt.s32.f32 %v60
    %v69 = vcvt.s32.f32 %v61
    %v70 = vcvt.s32.f32 %v62
    %v71 = vcvt.s32.f32 %v63
    %v72 = vcvt.s32.f32 %v64
    %v73 = vcvt.s32.f32 %v65
    %v74 = vcvt.s32.f32 %v66
    %v75 = vcvt.s32.f32 %v67
    %v76 = vld [vmem:[#allocation5] sm:$0xff]
    %v77 = vld [vmem:[#allocation5 + $0x8] sm:$0xff]
    %v78 = vld [vmem:[#allocation5 + $0x10] sm:$0xff]
    %v79 = vld [vmem:[#allocation5 + $0x18] sm:$0xff]
    %v80 = vld [vmem:[#allocation5 + $0x20] sm:$0xff]
    %v81 = vld [vmem:[#allocation5 + $0x28] sm:$0xff]
    %v82 = vld [vmem:[#allocation5 + $0x30] sm:$0xff]
    %v83 = vld [vmem:[#allocation5 + $0x38] sm:$0xff]
    %84 = vxpose.xlu0.b32.start [1/16] %v68, 128
    %85 = vxpose.xlu0.b32.cont [2/16] %v69, 128
    %86 = vxpose.xlu0.b32.cont [3/16] %v70, 128
    %87 = vxpose.xlu0.b32.cont [4/16] %v71, 128
    %88 = vxpose.xlu0.b32.cont [5/16] %v72, 128
    %89 = vxpose.xlu0.b32.cont [6/16] %v73, 128
    %90 = vxpose.xlu0.b32.cont [7/16] %v74, 128
    %91 = vxpose.xlu0.b32.cont [8/16] %v75, 128
    %92 = vxpose.xlu0.b32.cont [9/16] 0.0, 128
    %93 = vxpose.xlu0.b32.cont [10/16] 0.0, 128
    %94 = vxpose.xlu0.b32.cont [11/16] 0.0, 128
    %95 = vxpose.xlu0.b32.cont [12/16] 0.0, 128
    %96 = vxpose.xlu0.b32.cont [13/16] 0.0, 128
    %97 = vxpose.xlu0.b32.cont [14/16] 0.0, 128
    %98 = vxpose.xlu0.b32.cont [15/16] 0.0, 128
    %99 = vxpose.xlu0.b32.end [16/16] 0.0, 128
    %v100 = vpop.trf.xlu0
    %v101 = vpop.trf.xlu0
    %v102 = vpop.trf.xlu0
    %v103 = vpop.trf.xlu0
    %v104 = vpop.trf.xlu0
    %v105 = vpop.trf.xlu0
    %v106 = vpop.trf.xlu0
    %v107 = vpop.trf.xlu0
    %v108 = vpop.trf.xlu0
    %v109 = vpop.trf.xlu0
    %v110 = vpop.trf.xlu0
    %v111 = vpop.trf.xlu0
    %v112 = vpop.trf.xlu0
    %v113 = vpop.trf.xlu0
    %v114 = vpop.trf.xlu0
    %v115 = vpop.trf.xlu0
    %vm116 = vcmask 523264
    %v118 = vsel %vm116, %v100, 0
    %v121 = vsel %vm116, %v101, 0
    %123 = vmatprep.subr.mxu0 0.0
    %124 = vmatpush1.msra.mxu0 0.0
    %125 = vmatprep.subr.mxu0 0.0
    %126 = vmatpush1.msra.mxu0 0.0
    %127 = vmatprep.subr.mxu0 0.0
    %128 = vmatpush1.msra.mxu0 0.0
    %129 = vmatprep.subr.mxu0 0.0
    %130 = vmatpush1.msra.mxu0 0.0
    %131 = vmatprep.subr.mxu0 0.0
    %132 = vmatpush1.msra.mxu0 0.0
    %133 = vmatprep.subr.mxu0 0.0
    %134 = vmatpush1.msra.mxu0 0.0
    %135 = vmatprep.subr.mxu0 0.0
    %136 = vmatpush1.msra.mxu0 0.0
    %137 = vmatprep.subr.mxu0 0.0
    %138 = vmatpush1.msra.mxu0 0.0
    %139 = vmatprep.subr.mxu0 0.0
    %140 = vmatpush1.msra.mxu0 %v83
    %141 = vmatprep.subr.mxu0 0.0
    %142 = vmatpush1.msra.mxu0 %v82
    %143 = vmatprep.subr.mxu0 0.0
    %144 = vmatpush1.msra.mxu0 %v81
    %145 = vmatprep.subr.mxu0 0.0
    %146 = vmatpush1.msra.mxu0 %v80
    %147 = vmatprep.subr.mxu0 0.0
    %148 = vmatpush1.msra.mxu0 %v79
    %149 = vmatprep.subr.mxu0 0.0
    %150 = vmatpush1.msra.mxu0 %v78
    %151 = vmatprep.subr.mxu0 0.0
    %152 = vmatpush1.msra.mxu0 %v77
    %153 = vmatprep.subr.mxu0 0.0
    %154 = vmatpush1.msra.mxu0 %v76
    %155 = vmatprep.subr.mxu0 0.0
    %156 = vmatpush2.msra.mxu0 0.0
    %157 = vmatprep.subr.mxu0 0.0
    %158 = vmatpush2.msra.mxu0 0.0
    %159 = vmatprep.subr.mxu0 0.0
    %160 = vmatpush2.msra.mxu0 0.0
    %161 = vmatprep.subr.mxu0 0.0
    %162 = vmatpush2.msra.mxu0 0.0
    %163 = vmatprep.subr.mxu0 0.0
    %164 = vmatpush2.msra.mxu0 0.0
    %165 = vmatprep.subr.mxu0 0.0
    %166 = vmatpush2.msra.mxu0 0.0
    %167 = vmatprep.subr.mxu0 0.0
    %168 = vmatpush2.msra.mxu0 0.0
    %169 = vmatprep.subr.mxu0 0.0
    %170 = vmatpush2.msra.mxu0 0.0
    %171 = vmatprep.subr.mxu0 0.0
    %172 = vmatpush2.msra.mxu0 0.0
    %173 = vmatprep.subr.mxu0 0.0
    %174 = vmatpush2.msra.mxu0 0.0
    %175 = vmatprep.subr.mxu0 0.0
    %176 = vmatpush2.msra.mxu0 0.0
    %177 = vmatprep.subr.mxu0 0.0
    %178 = vmatpush2.msra.mxu0 0.0
    %179 = vmatprep.subr.mxu0 0.0
    %180 = vmatpush2.msra.mxu0 0.0
    %181 = vmatprep.subr.mxu0 0.0
    %182 = vmatpush2.msra.mxu0 0.0
    %183 = vmatprep.subr.mxu0 0.0
    %184 = vmatpush2.msra.mxu0 0.0
    %185 = vmatprep.subr.mxu0 0.0
    %186 = vmatpush2.msra.mxu0 0.0
    %187 = vmatprep.mubr.f32.mxu0 0.0
    %188 = vmatmul.mubr.f32.gmra.mxu0 %v118
    %v189 = vpop.f32.mrf.mxu0
    %v190 = vadd.f32 0.0, %v189
    %v191 = vpop.f32.mrf.mxu0
    %192 = vmatprep.mubr.f32.mxu0 0.0
    %193 = vmatmul.mubr.f32.gmra.mxu0 %v121
    %v194 = vpop.f32.mrf.mxu0
    %v195 = vadd.f32 0.0, %v194
    %v196 = vpop.f32.mrf.mxu0
    %197 = vdwg.mxu0
    %v198 = vmul.f32 %v190, 11.313708
    %v199 = vmul.f32 %v195, 11.313708
    %200 = vst [vmem:[#allocation7] sm:$0xff] %v198
    %201 = vst [vmem:[#allocation7 + $0x8] sm:$0xff] %v199
    // Predicated region
    $region18: #{tpu_custom_call.1} parent=1 // pred_check
      _
    $region19: #{tpu_custom_call.1} parent=1 // pred_check_branch
      %203 = sbr.rel (0) target = $region21
    $region20: #{tpu_custom_call.1} parent=1 // pred_region
      %s205 = ssub.s32 256, 256
      %206 = vsyncadd [#allocation4], %s205
      %s207 = sshll.u32 [#allocation7], 4
      %s208 = int_to_ptr.vmem [resolvable:$true] %s207
      %213 = dma.vmem_to_hbm [thread:$0]  %s208, 256, %s2, [#allocation4], 128, 128, 8
    $region21: #{tpu_custom_call.1} parent=1 // pred_fallthru
      _
    // Predicated region
    $region22: #{tpu_custom_call.1} parent=1 // pred_check
      _
    $region23: #{tpu_custom_call.1} parent=1 // pred_check_branch
      %215 = sbr.rel (0) target = $region25
    $region24: #{tpu_custom_call.1} parent=1 // pred_region
      %216 = dma.done [#allocation4], 256
    $region25: #{tpu_custom_call.1} parent=1 // pred_fallthru
      _
    %217 = vsyncpa [#allocation3], 1
    %218 = vsyncpa [#allocation6], 1
    %219 = vsyncpa [#allocation4], 1

</llo_original>
